<compile_context>
chip_gen: v5e
topology: v5e:2x2
jax: 0.10.0
libtpu: 0.0.40
codegen_flags: <defaults>
</compile_context>

<pallas_src>
import functools

import jax
import jax.numpy as jnp
from jax.experimental import pallas as pl
from jax.experimental.pallas import tpu as pltpu

HIDDEN_MID = 200      # fc1 output features (fixed by the module)
HIDDEN_PAD = 256      # lane-aligned padded width (multiple of 128)


def _round_up(x, m):
    return ((x + m - 1) // m) * m


def embedding_net_kernel(x_ref, w1t_ref, b1_ref, w2t_ref, b2_ref, o_ref):
    # dropout1 (p=0.0) and dropout2 (eval mode) are identities.
    # h = tanh(x @ W1^T + b1) -- bf16 inputs, f32 accumulate, f32 bias/tanh.
    h = jnp.dot(x_ref[...], w1t_ref[...], preferred_element_type=jnp.float32)
    h = jnp.tanh(h + b1_ref[...])            # b1 is [1, HIDDEN_PAD]; padded lanes -> tanh(0)=0
    # out = h @ W2^T + b2 -- padded W2t rows are zero so they contribute nothing.
    out = jnp.dot(h.astype(w2t_ref.dtype), w2t_ref[...],
                  preferred_element_type=jnp.float32)
    o_ref[...] = (out + b2_ref[...]).astype(o_ref.dtype)


def prepare_params(w1, b1, w2, b2):
    """One-time weight prep (hoisted out of the per-call path).

    w1: [200, H], b1: [200], w2: [O, 200], b2: [O]  (PyTorch Linear layout)
    Returns lane-aligned, pre-transposed params:
      w1t_p: bf16 [H, 256], b1_p: f32 [1, 256], w2t_p: bf16 [256, O], b2_p: f32 [1, O]
    """
    H = w1.shape[1]
    O = w2.shape[0]
    pad = HIDDEN_PAD - HIDDEN_MID

    w1t_p = jnp.pad(w1.T.astype(jnp.bfloat16), ((0, 0), (0, pad)))          # [H, 256]
    b1_p = jnp.pad(b1.astype(jnp.float32), (0, pad)).reshape(1, HIDDEN_PAD)  # [1, 256], pad = 0
    w2t_p = jnp.pad(w2.T.astype(jnp.bfloat16), ((0, pad), (0, 0)))           # [256, O], pad rows = 0
    b2_p = b2.astype(jnp.float32).reshape(1, O)                              # [1, O]
    return w1t_p, b1_p, w2t_p, b2_p


@functools.partial(jax.jit, static_argnames=("tb",))
def embedding_net_forward(x, w1t_p, b1_p, w2t_p, b2_p, tb=512):
    """x: [B, H] f32/bf16; params from prepare_params(). Returns [B, O] f32."""
    B, H = x.shape
    O = w2t_p.shape[1]

    # Batch tile: multiple of 16 (bf16 sublane packing), capped for VMEM headroom
    # (fits comfortably in v5e's 16 MiB scoped default and v7x's 64 MiB physical VMEM).
    tb = min(tb, max(16, _round_up(B, 16)))
    tb = _round_up(tb, 16)
    Bp = _round_up(B, tb)

    x_bf16 = x.astype(jnp.bfloat16)
    if Bp != B:
        x_bf16 = jnp.pad(x_bf16, ((0, Bp - B), (0, 0)))

    num_blocks = Bp // tb

    cost = pl.CostEstimate(
        flops=2 * Bp * (H * HIDDEN_PAD + HIDDEN_PAD * O),
        transcendentals=Bp * HIDDEN_PAD,
        bytes_accessed=(x_bf16.size * 2 + w1t_p.size * 2 + w2t_p.size * 2
                        + b1_p.size * 4 + b2_p.size * 4 + Bp * O * 4),
    )

    out = pl.pallas_call(
        embedding_net_kernel,
        out_shape=jax.ShapeDtypeStruct((Bp, O), jnp.float32),
        grid_spec=pltpu.PrefetchScalarGridSpec(
            num_scalar_prefetch=0,
            grid=(num_blocks,),
            in_specs=[
                pl.BlockSpec((tb, H), lambda i: (i, 0)),            # x: streamed per batch tile
                pl.BlockSpec((H, HIDDEN_PAD), lambda i: (0, 0)),    # W1^T: VMEM-resident
                pl.BlockSpec((1, HIDDEN_PAD), lambda i: (0, 0)),    # b1
                pl.BlockSpec((HIDDEN_PAD, O), lambda i: (0, 0)),    # W2^T
                pl.BlockSpec((1, O), lambda i: (0, 0)),             # b2
            ],
            out_specs=pl.BlockSpec((tb, O), lambda i: (i, 0)),
        ),
        compiler_params=pltpu.CompilerParams(
            dimension_semantics=("parallel",),   # shards batch tiles across v7x's 2 TCs
            vmem_limit_bytes=64 << 20,
        ),
        cost_estimate=cost,
    )(x_bf16, w1t_p, b1_p, w2t_p, b2_p)

    return out[:B] if Bp != B else out


def init_linear(key, out_features, in_features, dtype=jnp.float32):
    """Deterministic PyTorch-style Linear init: U(-1/sqrt(in), 1/sqrt(in))."""
    k_w, k_b = jax.random.split(key)
    bound = 1.0 / jnp.sqrt(jnp.asarray(in_features, dtype))
    w = jax.random.uniform(k_w, (out_features, in_features), dtype, -bound, bound)
    b = jax.random.uniform(k_b, (out_features,), dtype, -bound, bound)
    return w, b


# TODO(synk): batchnorm / layernorm branches are off by default (False) and are not implemented here.

if __name__ == "__main__":
    hidden_size = 32
    output_size = 16
    batch = 8

    key = jax.random.PRNGKey(0)
    k_x, k_fc1, k_fc2 = jax.random.split(key, 3)

    x = jax.random.normal(k_x, (batch, hidden_size), jnp.float32)
    w1, b1 = init_linear(k_fc1, HIDDEN_MID, hidden_size)    # fc1: hidden -> 200
    w2, b2 = init_linear(k_fc2, output_size, HIDDEN_MID)    # fc2: 200 -> output

    # One-time param prep (transpose / pad / cast), hoisted out of the call path.
    params = prepare_params(w1, b1, w2, b2)

    out = embedding_net_forward(x, *params)
    out = jax.block_until_ready(out)

    # Reference check in plain JAX (eval-mode dropout = identity), f32.
    ref = jnp.tanh(x @ w1.T + b1) @ w2.T + b2
    assert out.shape == (batch, output_size)
    # bf16 inputs with f32 accumulation: slightly looser tolerance than pure f32.
    assert jnp.allclose(out, ref, atol=3e-2, rtol=3e-2), float(jnp.max(jnp.abs(out - ref)))

    print("KERNEL_OK")
</pallas_src>

<mosaic_0001>
module attributes {stable_mosaic.version = 11 : i64} {
  func.func @embedding_net_kernel(%arg0: i32, %arg1: memref<16x32xbf16, #tpu.memory_space<vmem>>, %arg2: memref<32x256xbf16, #tpu.memory_space<vmem>>, %arg3: memref<1x256xf32, #tpu.memory_space<vmem>>, %arg4: memref<256x16xbf16, #tpu.memory_space<vmem>>, %arg5: memref<1x16xf32, #tpu.memory_space<vmem>>, %arg6: memref<16x16xf32, #tpu.memory_space<vmem>>) attributes {dimension_semantics = [#tpu.dimension_semantics<parallel>], iteration_bounds = array<i64: 1>, scalar_prefetch = 0 : i64, scratch_operands = 0 : i64, tpu.core_type = #tpu.core_type<tc>, window_params = [{transform_indices = @transform_0, window_bounds = array<i64: 16, 32>}, {pipeline_mode = #tpu.pipeline_mode<synchronous>, transform_indices = @transform_1, window_bounds = array<i64: 32, 256>}, {pipeline_mode = #tpu.pipeline_mode<synchronous>, transform_indices = @transform_2, window_bounds = array<i64: 1, 256>}, {pipeline_mode = #tpu.pipeline_mode<synchronous>, transform_indices = @transform_3, window_bounds = array<i64: 256, 16>}, {pipeline_mode = #tpu.pipeline_mode<synchronous>, transform_indices = @transform_4, window_bounds = array<i64: 1, 16>}, {transform_indices = @transform_5, window_bounds = array<i64: 16, 16>}]} {
    %c0 = arith.constant 0 : index
    %c0_0 = arith.constant 0 : index
    %0 = vector.load %arg1[%c0, %c0_0] : memref<16x32xbf16, #tpu.memory_space<vmem>>, vector<16x32xbf16>
    %c0_1 = arith.constant 0 : index
    %c0_2 = arith.constant 0 : index
    %1 = vector.load %arg2[%c0_1, %c0_2] : memref<32x256xbf16, #tpu.memory_space<vmem>>, vector<32x256xbf16>
    %cst = arith.constant dense<0.000000e+00> : vector<16x256xf32>
    %2 = tpu.matmul %0, %1, %cst {dimension_numbers = #tpu.dot_dimension_numbers<[1], [0], [0], [1], [0, 0, 1, 1], [], []>} : vector<16x32xbf16>, vector<32x256xbf16>, vector<16x256xf32> -> vector<16x256xf32>
    %c0_3 = arith.constant 0 : index
    %c0_4 = arith.constant 0 : index
    %3 = vector.load %arg3[%c0_3, %c0_4] : memref<1x256xf32, #tpu.memory_space<vmem>>, vector<1x256xf32>
    %4 = vector.broadcast %3 : vector<1x256xf32> to vector<16x256xf32>
    %5 = arith.addf %2, %4 : vector<16x256xf32>
    %6 = math.tanh %5 : vector<16x256xf32>
    %7 = arith.truncf %6 : vector<16x256xf32> to vector<16x256xbf16>
    %c0_5 = arith.constant 0 : index
    %c0_6 = arith.constant 0 : index
    %8 = vector.load %arg4[%c0_5, %c0_6] : memref<256x16xbf16, #tpu.memory_space<vmem>>, vector<256x16xbf16>
    %cst_7 = arith.constant dense<0.000000e+00> : vector<16x16xf32>
    %9 = tpu.matmul %7, %8, %cst_7 {dimension_numbers = #tpu.dot_dimension_numbers<[1], [0], [0], [1], [0, 0, 1, 1], [], []>} : vector<16x256xbf16>, vector<256x16xbf16>, vector<16x16xf32> -> vector<16x16xf32>
    %c0_8 = arith.constant 0 : index
    %c0_9 = arith.constant 0 : index
    %10 = vector.load %arg5[%c0_8, %c0_9] : memref<1x16xf32, #tpu.memory_space<vmem>>, vector<1x16xf32>
    %11 = vector.broadcast %10 : vector<1x16xf32> to vector<16x16xf32>
    %12 = arith.addf %9, %11 : vector<16x16xf32>
    %c0_10 = arith.constant 0 : index
    %c0_11 = arith.constant 0 : index
    %13 = vector.load %arg6[%c0_10, %c0_11] : memref<16x16xf32, #tpu.memory_space<vmem>>, vector<16x16xf32>
    tpu.vector_store %arg6[%c0_10, %c0_11], %12 {strides = array<i32>} : memref<16x16xf32, #tpu.memory_space<vmem>>, vector<16x16xf32>,
    return
  }
  func.func @transform_0(%arg0: i32) -> (i32, i32) {
    %c0_i32 = arith.constant 0 : i32
    %c0_i32_0 = arith.constant 0 : i32
    return %arg0, %c0_i32 : i32, i32
  }
  func.func @transform_1(%arg0: i32) -> (i32, i32) {
    %c0_i32 = arith.constant 0 : i32
    %c0_i32_0 = arith.constant 0 : i32
    %c0_i32_1 = arith.constant 0 : i32
    return %c0_i32, %c0_i32_0 : i32, i32
  }
  func.func @transform_2(%arg0: i32) -> (i32, i32) {
    %c0_i32 = arith.constant 0 : i32
    %c0_i32_0 = arith.constant 0 : i32
    %c0_i32_1 = arith.constant 0 : i32
    return %c0_i32, %c0_i32_0 : i32, i32
  }
  func.func @transform_3(%arg0: i32) -> (i32, i32) {
    %c0_i32 = arith.constant 0 : i32
    %c0_i32_0 = arith.constant 0 : i32
    %c0_i32_1 = arith.constant 0 : i32
    return %c0_i32, %c0_i32_0 : i32, i32
  }
  func.func @transform_4(%arg0: i32) -> (i32, i32) {
    %c0_i32 = arith.constant 0 : i32
    %c0_i32_0 = arith.constant 0 : i32
    %c0_i32_1 = arith.constant 0 : i32
    return %c0_i32, %c0_i32_0 : i32, i32
  }
  func.func @transform_5(%arg0: i32) -> (i32, i32) {
    %c0_i32 = arith.constant 0 : i32
    %c0_i32_0 = arith.constant 0 : i32
    return %arg0, %c0_i32 : i32, i32
  }
}

</mosaic_0001>

<llo_original>
// kernel: embedding_net_forward.1
$region0: #{embedding_net_forward.1}
  #allocation0 [shape = 'u32[]', space=smem, size = 0x4, offset = 0x4, fixed_abs, tag = 'smem constant byte address 0x4 - core index']
  #allocation1 [shape = 'u32[72,128]{1,0:T(1,128)}', space=vmem, size = 0x9000, scoped, tag = 'internal scratch']
  %s0 = inlined_call_operand.vmem [shape: bf16[16,32], index: 0, kind: input, shape index: {}]
  %s1 = inlined_call_operand.vmem [shape: bf16[32,256], index: 1, kind: input, shape index: {}]
  %s2 = inlined_call_operand.vmem [shape: f32[1,256], index: 2, kind: input, shape index: {}]
  %s3 = inlined_call_operand.vmem [shape: bf16[256,16], index: 3, kind: input, shape index: {}]
  %s4 = inlined_call_operand.vmem [shape: f32[1,16], index: 4, kind: input, shape index: {}]
  %s5 = inlined_call_operand.vmem [shape: f32[16,16], index: 5, kind: output, shape index: {}]
  %s6 = sld [smem:[#allocation0]]
  $region30: #{embedding_net_forward.1} parent=0
    _
  %s8 = ssub.s32 1, %s6
  %s9 = scalar_select 0, %s8, %s6
  // Predicated region
  $region2: #{embedding_net_forward.1} parent=0 // pred_check
    _
  $region3: #{embedding_net_forward.1} parent=0 // pred_check_branch
    %11 = sbr.rel (0) target = $region5
  $region4: #{embedding_net_forward.1} parent=0 // pred_region
    _
  $region5: #{embedding_net_forward.1} parent=0 // pred_fallthru
    _
  // Predicated region
  $region6: #{embedding_net_forward.1} parent=0 // pred_check
    _
  $region7: #{embedding_net_forward.1} parent=0 // pred_check_branch
    %13 = sbr.rel (0) target = $region9
  $region8: #{embedding_net_forward.1} parent=0 // pred_region
    _
  $region9: #{embedding_net_forward.1} parent=0 // pred_fallthru
    _
  // Predicated region
  $region10: #{embedding_net_forward.1} parent=0 // pred_check
    _
  $region11: #{embedding_net_forward.1} parent=0 // pred_check_branch
    %15 = sbr.rel (0) target = $region13
  $region12: #{embedding_net_forward.1} parent=0 // pred_region
    _
  $region13: #{embedding_net_forward.1} parent=0 // pred_fallthru
    _
  // Predicated region
  $region14: #{embedding_net_forward.1} parent=0 // pred_check
    _
  $region15: #{embedding_net_forward.1} parent=0 // pred_check_branch
    %17 = sbr.rel (0) target = $region17
  $region16: #{embedding_net_forward.1} parent=0 // pred_region
    _
  $region17: #{embedding_net_forward.1} parent=0 // pred_fallthru
    _
  // Predicated region
  $region18: #{embedding_net_forward.1} parent=0 // pred_check
    _
  $region19: #{embedding_net_forward.1} parent=0 // pred_check_branch
    %19 = sbr.rel (0) target = $region21
  $region20: #{embedding_net_forward.1} parent=0 // pred_region
    _
  $region21: #{embedding_net_forward.1} parent=0 // pred_fallthru
    _
  %v21 = vld [vmem:[%s0] sm:$0xf]
  %v22 = vld [vmem:[%s0 + $0x4] sm:$0xf]
  %v23 = vld [vmem:[%s1] sm:$0xff]
  %v24 = vld [vmem:[%s1 + $0x8] sm:$0xff]
  %v25 = vld [vmem:[%s1 + $0x10] sm:$0xff]
  %v26 = vld [vmem:[%s1 + $0x18] sm:$0xff]
  %v27 = vld [vmem:[%s2] sm:$0x3]
  %v29 = vperm.slane %v27, 0
  %v30 = vperm.slane %v27, 1
  %v35 = vunpack.c.l.b16 %v21
  %v36 = vunpack.c.l.b16 %v22
  %v37 = vpack.c.b16 %v36, %v35
  %v42 = vunpack.c.l.b16 %v23
  %v43 = vunpack.c.h.b16 %v23
  %v44 = vunpack.c.l.b16 %v24
  %v45 = vunpack.c.h.b16 %v24
  %v46 = vunpack.c.l.b16 %v25
  %v47 = vunpack.c.h.b16 %v25
  %v48 = vunpack.c.l.b16 %v26
  %v49 = vunpack.c.h.b16 %v26
  %v50 = vpack.c.b16 %v44, %v42
  %v51 = vpack.c.b16 %v45, %v43
  %v52 = vpack.c.b16 %v48, %v46
  %v53 = vpack.c.b16 %v49, %v47
  %vm58 = vcmask 261120
  %v60 = vsel %vm58, %v37, 0
  %62 = vmatpush.bf16.msra.mxu0 0
  %63 = vmatpush.bf16.msra.mxu0 0
  %64 = vmatpush.bf16.msra.mxu0 0
  %65 = vmatpush.bf16.msra.mxu0 0
  %66 = vmatpush.bf16.msra.mxu0 0
  %67 = vmatpush.bf16.msra.mxu0 0
  %68 = vmatpush.bf16.msra.mxu0 %v52
  %69 = vmatpush.bf16.msra.mxu0 %v50
  %70 = vmatmul.bf16.gmra.mxu0 %v60
  %v71 = vpop.f32.mrf.mxu0
  %v72 = vadd.f32 %v29, %v71
  %v73 = vpop.f32.mrf.mxu0
  %v74 = vadd.f32 %v29, %v73
  %75 = vdwg.mxu0
  %76 = vmatpush.bf16.msra.mxu0 0
  %77 = vmatpush.bf16.msra.mxu0 0
  %78 = vmatpush.bf16.msra.mxu0 0
  %79 = vmatpush.bf16.msra.mxu0 0
  %80 = vmatpush.bf16.msra.mxu0 0
  %81 = vmatpush.bf16.msra.mxu0 0
  %82 = vmatpush.bf16.msra.mxu0 %v53
  %83 = vmatpush.bf16.msra.mxu0 %v51
  %84 = vmatmul.bf16.gmra.mxu0 %v60
  %v85 = vpop.f32.mrf.mxu0
  %v86 = vadd.f32 %v30, %v85
  %v87 = vpop.f32.mrf.mxu0
  %v88 = vadd.f32 %v30, %v87
  %89 = vdwg.mxu0
  %v90 = vtanh.pop %v72
  %v91 = vtanh.pop %v86
  %v92 = vtanh.pop %v74
  %v93 = vtanh.pop %v88
  %v94 = vpack.c.bf16 %v92, %v90
  %v95 = vpack.c.bf16 %v93, %v91
  %v96 = vld [vmem:[%s3] sm:$0xf]
  %v97 = vld [vmem:[%s3 + $0x4] sm:$0xf]
  %v98 = vld [vmem:[%s3 + $0x8] sm:$0xf]
  %v99 = vld [vmem:[%s3 + $0xc] sm:$0xf]
  %v100 = vld [vmem:[%s3 + $0x10] sm:$0xf]
  %v101 = vld [vmem:[%s3 + $0x14] sm:$0xf]
  %v102 = vld [vmem:[%s3 + $0x18] sm:$0xf]
  %v103 = vld [vmem:[%s3 + $0x1c] sm:$0xf]
  %v104 = vld [vmem:[%s3 + $0x20] sm:$0xf]
  %v105 = vld [vmem:[%s3 + $0x24] sm:$0xf]
  %v106 = vld [vmem:[%s3 + $0x28] sm:$0xf]
  %v107 = vld [vmem:[%s3 + $0x2c] sm:$0xf]
  %v108 = vld [vmem:[%s3 + $0x30] sm:$0xf]
  %v109 = vld [vmem:[%s3 + $0x34] sm:$0xf]
  %v110 = vld [vmem:[%s3 + $0x38] sm:$0xf]
  %v111 = vld [vmem:[%s3 + $0x3c] sm:$0xf]
  %v112 = vld [vmem:[%s3 + $0x40] sm:$0xf]
  %v113 = vld [vmem:[%s3 + $0x44] sm:$0xf]
  %v114 = vld [vmem:[%s3 + $0x48] sm:$0xf]
  %v115 = vld [vmem:[%s3 + $0x4c] sm:$0xf]
  %v116 = vld [vmem:[%s3 + $0x50] sm:$0xf]
  %v117 = vld [vmem:[%s3 + $0x54] sm:$0xf]
  %v118 = vld [vmem:[%s3 + $0x58] sm:$0xf]
  %v119 = vld [vmem:[%s3 + $0x5c] sm:$0xf]
  %v120 = vld [vmem:[%s3 + $0x60] sm:$0xf]
  %v121 = vld [vmem:[%s3 + $0x64] sm:$0xf]
  %v122 = vld [vmem:[%s3 + $0x68] sm:$0xf]
  %v123 = vld [vmem:[%s3 + $0x6c] sm:$0xf]
  %v124 = vld [vmem:[%s3 + $0x70] sm:$0xf]
  %v125 = vld [vmem:[%s3 + $0x74] sm:$0xf]
  %v126 = vld [vmem:[%s3 + $0x78] sm:$0xf]
  %v127 = vld [vmem:[%s3 + $0x7c] sm:$0xf]
  %v128 = vld [vmem:[%s4] sm:$0x1]
  %v130 = vperm.slane %v128, 0
  %v164 = vunpack.c.l.b16 %v96
  %v165 = vunpack.c.l.b16 %v97
  %v166 = vunpack.c.l.b16 %v98
  %v167 = vunpack.c.l.b16 %v99
  %v168 = vunpack.c.l.b16 %v100
  %v169 = vunpack.c.l.b16 %v101
  %v170 = vunpack.c.l.b16 %v102
  %v171 = vunpack.c.l.b16 %v103
  %v172 = vunpack.c.l.b16 %v104
  %v173 = vunpack.c.l.b16 %v105
  %v174 = vunpack.c.l.b16 %v106
  %v175 = vunpack.c.l.b16 %v107
  %v176 = vunpack.c.l.b16 %v108
  %v177 = vunpack.c.l.b16 %v109
  %v178 = vunpack.c.l.b16 %v110
  %v179 = vunpack.c.l.b16 %v111
  %v180 = vunpack.c.l.b16 %v112
  %v181 = vunpack.c.l.b16 %v113
  %v182 = vunpack.c.l.b16 %v114
  %v183 = vunpack.c.l.b16 %v115
  %v184 = vunpack.c.l.b16 %v116
  %v185 = vunpack.c.l.b16 %v117
  %v186 = vunpack.c.l.b16 %v118
  %v187 = vunpack.c.l.b16 %v119
  %v188 = vunpack.c.l.b16 %v120
  %v189 = vunpack.c.l.b16 %v121
  %v190 = vunpack.c.l.b16 %v122
  %v191 = vunpack.c.l.b16 %v123
  %v192 = vunpack.c.l.b16 %v124
  %v193 = vunpack.c.l.b16 %v125
  %v194 = vunpack.c.l.b16 %v126
  %v195 = vunpack.c.l.b16 %v127
  %v196 = vpack.c.b16 %v165, %v164
  %v197 = vpack.c.b16 %v167, %v166
  %v198 = vpack.c.b16 %v169, %v168
  %v199 = vpack.c.b16 %v171, %v170
  %v200 = vpack.c.b16 %v173, %v172
  %v201 = vpack.c.b16 %v175, %v174
  %v202 = vpack.c.b16 %v177, %v176
  %v203 = vpack.c.b16 %v179, %v178
  %v204 = vpack.c.b16 %v181, %v180
  %v205 = vpack.c.b16 %v183, %v182
  %v206 = vpack.c.b16 %v185, %v184
  %v207 = vpack.c.b16 %v187, %v186
  %v208 = vpack.c.b16 %v189, %v188
  %v209 = vpack.c.b16 %v191, %v190
  %v210 = vpack.c.b16 %v193, %v192
  %v211 = vpack.c.b16 %v195, %v194
  %228 = vmatpush.bf16.msra.mxu0 %v203
  %229 = vmatpush.bf16.msra.mxu0 %v202
  %230 = vmatpush.bf16.msra.mxu0 %v201
  %231 = vmatpush.bf16.msra.mxu0 %v200
  %232 = vmatpush.bf16.msra.mxu0 %v199
  %233 = vmatpush.bf16.msra.mxu0 %v198
  %234 = vmatpush.bf16.msra.mxu0 %v197
  %235 = vmatpush.bf16.msra.mxu0 %v196
  %236 = vmatmul.bf16.gmra.mxu0 %v94
  %v237 = vpop.f32.mrf.mxu0
  %v238 = vadd.f32 %v130, %v237
  %v239 = vpop.f32.mrf.mxu0
  %v240 = vadd.f32 %v130, %v239
  %241 = vdwg.mxu0
  %242 = vmatpush.bf16.msra.mxu0 %v211
  %243 = vmatpush.bf16.msra.mxu0 %v210
  %244 = vmatpush.bf16.msra.mxu0 %v209
  %245 = vmatpush.bf16.msra.mxu0 %v208
  %246 = vmatpush.bf16.msra.mxu0 %v207
  %247 = vmatpush.bf16.msra.mxu0 %v206
  %248 = vmatpush.bf16.msra.mxu0 %v205
  %249 = vmatpush.bf16.msra.mxu0 %v204
  %250 = vmatmul.bf16.gmra.mxu0 %v95
  %v251 = vpop.f32.mrf.mxu0
  %v252 = vadd.f32 %v238, %v251
  %v253 = vpop.f32.mrf.mxu0
  %v254 = vadd.f32 %v240, %v253
  %255 = vdwg.mxu0
  %vm256 = vcmask 130048
  %257 = vst.msk [vmem:[%s5] sm:$0xff] %vm256, %v252
  %258 = vst.msk [vmem:[%s5 + $0x8] sm:$0xff] %vm256, %v254
  // Predicated region
  $region22: #{embedding_net_forward.1} parent=0 // pred_check
    _
  $region23: #{embedding_net_forward.1} parent=0 // pred_check_branch
    %260 = sbr.rel (0) target = $region25
  $region24: #{embedding_net_forward.1} parent=0 // pred_region
    _
  $region25: #{embedding_net_forward.1} parent=0 // pred_fallthru
    _
  // Predicated region
  $region26: #{embedding_net_forward.1} parent=0 // pred_check
    _
  $region27: #{embedding_net_forward.1} parent=0 // pred_check_branch
    %262 = sbr.rel (0) target = $region29
  $region28: #{embedding_net_forward.1} parent=0 // pred_region
    _
  $region29: #{embedding_net_forward.1} parent=0 // pred_fallthru
    _

</llo_original>
